<compile_context>
chip_gen: v6e
topology: v6e:2x2x1
jax: 0.10.0
libtpu: 0.0.40
codegen_flags: <defaults>
</compile_context>

<pallas_src>
import jax
import jax.numpy as jnp
from jax.experimental import pallas as pl
from jax.experimental.pallas import tpu as pltpu

BN_EPS = 1e-5


def basic_block_kernel(x_ref, w1_ref, b1_ref, w2_ref, b2_ref, o_ref):
    # x tile kept in f32: it is reused exactly for the residual add.
    x = x_ref[...]                                               # (TN, D) f32

    # fc1 (BatchNorm already folded into w1/b1 by the wrapper) + ReLU.
    # MXU matmul in bf16 with f32 accumulation; bias+relu on the f32
    # accumulator, then a single cast to bf16 for the second matmul.
    h = jnp.dot(x.astype(jnp.bfloat16), w1_ref[...],
                preferred_element_type=jnp.float32)
    h = jnp.maximum(h + b1_ref[...], 0.0).astype(jnp.bfloat16)   # (TN, Dh) bf16
    # TODO(synk): Dropout (dropdout0/1) is identity in eval mode; training-mode
    #             stochastic masking via pltpu.prng_random_bits not implemented.

    # fc2 + residual add (f32).
    y = jnp.dot(h, w2_ref[...], preferred_element_type=jnp.float32) + b2_ref[...]
    o_ref[...] = (y + x).astype(o_ref.dtype)


def _pick_batch_tile(N, block_n):
    """Pick a batch tile that avoids the jnp.pad HBM round-trip when possible."""
    if N <= block_n:
        return N, N                      # single full-batch tile, no padding
    # Prefer a sublane-aligned tile that divides N exactly.
    for bn in range(block_n - (block_n % 8), 7, -8):
        if N % bn == 0:
            return bn, N
    # Fallback: pad (last resort — costs an extra HBM round-trip of x).
    n_pad = pl.cdiv(N, block_n) * block_n
    return block_n, n_pad


def basic_block(x, params, *, block_n=512):
    """out = fc2(relu(fc1(bn0(x)))) + x, eval-mode BN, dropout = identity.

    x: (N, D) float32. D and the hidden dim must be multiples of 128
    (multiples of 256 recommended on v6e/v7x for full 256x256 MXU tiles).
    """
    N, D = x.shape
    Dh = params["w1"].shape[1]
    assert D % 128 == 0 and Dh % 128 == 0, "pad feature dims to multiples of 128"

    # ---- Fold BatchNorm1d (running stats) into fc1, once per call, in f32 ----
    scale = params["gamma"] * jax.lax.rsqrt(params["var"] + BN_EPS)    # (1, D)
    shift = params["beta"] - params["mean"] * scale                    # (1, D)
    w1 = (scale.reshape(D, 1) * params["w1"]).astype(jnp.bfloat16)     # (D, Dh)
    b1 = (params["b1"] + shift @ params["w1"]).astype(jnp.float32)     # (1, Dh)
    w2 = params["w2"].astype(jnp.bfloat16)                             # (Dh, D)
    b2 = params["b2"].astype(jnp.float32)                              # (1, D)

    # ---- Batch tiling: avoid padding when we can ----
    bn_eff, Np = _pick_batch_tile(N, block_n)
    n_tiles = Np // bn_eff
    x_p = jnp.pad(x, ((0, Np - N), (0, 0))) if Np != N else x

    # ---- Explicit VMEM budget (default scoped limit is 16/32 MiB) ----
    # x + out tiles double-buffered (f32), weights single-buffered (bf16).
    needed = (4 * bn_eff * D * 4                # 2 bufs each for x and out
              + 2 * D * Dh * 2                  # w1 + w2, bf16, Buffered(1)
              + (Dh + D) * 4)                   # biases, f32, Buffered(1)
    vmem_limit = min(max(int(needed * 1.5), 32 * 1024 * 1024), 64 * 1024 * 1024)

    # NOTE: at these sizes both weights fit comfortably in VMEM; for much
    # larger D/Dh add a K grid axis marked "arbitrary" with a pl.when-initialized
    # f32 accumulator scratch instead of growing a single full-K tile.  On v7x
    # (64 MiB/TC) that fallback kicks in at roughly half the D*Dh v6e allows.
    out = pl.pallas_call(
        basic_block_kernel,
        out_shape=jax.ShapeDtypeStruct((Np, D), x.dtype),
        grid=(n_tiles,),
        in_specs=[
            # x: streamed over the batch (double-buffered by the pipeline).
            pl.BlockSpec((bn_eff, D), lambda i: (i, 0)),
            # Weights/biases: VMEM-resident, constant index_map -> single buffer.
            pl.BlockSpec((D, Dh), lambda i: (0, 0), pipeline_mode=pl.Buffered(1)),
            pl.BlockSpec((1, Dh), lambda i: (0, 0), pipeline_mode=pl.Buffered(1)),
            pl.BlockSpec((Dh, D), lambda i: (0, 0), pipeline_mode=pl.Buffered(1)),
            pl.BlockSpec((1, D), lambda i: (0, 0), pipeline_mode=pl.Buffered(1)),
        ],
        out_specs=pl.BlockSpec((bn_eff, D), lambda i: (i, 0)),
        compiler_params=pltpu.CompilerParams(
            dimension_semantics=("parallel",),   # shard batch tiles across TCs
            vmem_limit_bytes=vmem_limit,
        ),
    )(x_p, w1, b1, w2, b2)

    return out[:N] if Np != N else out


def init_params(key, d, d_hidden):
    k1, k2, k3, k4 = jax.random.split(key, 4)
    # PyTorch Linear stores weight as (out, in); we keep it pre-transposed (in, out).
    w1 = jax.random.normal(k1, (d, d_hidden), jnp.float32) * 0.05
    b1 = jax.random.normal(k2, (1, d_hidden), jnp.float32) * 0.05
    w2 = jax.random.normal(k3, (d_hidden, d), jnp.float32) * 0.05
    b2 = jax.random.normal(k4, (1, d), jnp.float32) * 0.05
    # BatchNorm1d affine params + running stats (deterministic, nontrivial).
    gamma = jnp.full((1, d), 1.0, jnp.float32)
    beta = jnp.full((1, d), 0.1, jnp.float32)
    mean = jnp.linspace(-0.5, 0.5, d, dtype=jnp.float32).reshape(1, d)
    var = jnp.linspace(0.5, 1.5, d, dtype=jnp.float32).reshape(1, d)
    return dict(w1=w1, b1=b1, w2=w2, b2=b2,
                gamma=gamma, beta=beta, mean=mean, var=var)


def reference(x, p):
    # Pure-f32 reference matching the PyTorch module in eval mode.
    xn = (x - p["mean"]) / jnp.sqrt(p["var"] + BN_EPS) * p["gamma"] + p["beta"]
    h = jnp.maximum(xn @ p["w1"] + p["b1"], 0.0)
    return h @ p["w2"] + p["b2"] + x


if __name__ == "__main__":
    key = jax.random.PRNGKey(0)
    kx, kp = jax.random.split(key)

    # Small but MXU-friendly shapes: batch=256, d=256, d_hidden=256
    # (256-aligned feature dims -> full MXU tiles on v6e/v7x).
    N, D, DH = 256, 256, 256
    x = jax.random.normal(kx, (N, D), jnp.float32)
    params = init_params(kp, D, DH)

    out = basic_block(x, params, block_n=512)
    out = jax.block_until_ready(out)

    ref = reference(x, params)
    assert out.shape == (N, D)
    # bf16 matmul operands (f32 accumulation) -> loose-but-meaningful tolerance.
    assert jnp.allclose(out, ref, atol=5e-2, rtol=5e-2)
    print("KERNEL_OK")
</pallas_src>

<mosaic_0001>
module attributes {stable_mosaic.version = 11 : i64} {
  func.func @basic_block_kernel(%arg0: i32, %arg1: memref<256x256xf32, #tpu.memory_space<vmem>>, %arg2: memref<256x256xbf16, #tpu.memory_space<vmem>>, %arg3: memref<1x256xf32, #tpu.memory_space<vmem>>, %arg4: memref<256x256xbf16, #tpu.memory_space<vmem>>, %arg5: memref<1x256xf32, #tpu.memory_space<vmem>>, %arg6: memref<256x256xf32, #tpu.memory_space<vmem>>) attributes {dimension_semantics = [#tpu.dimension_semantics<parallel>], iteration_bounds = array<i64: 1>, scalar_prefetch = 0 : i64, scratch_operands = 0 : i64, tpu.core_type = #tpu.core_type<tc>, window_params = [{transform_indices = @transform_0, window_bounds = array<i64: 256, 256>}, {pipeline_mode = #tpu.pipeline_mode<synchronous>, transform_indices = @transform_1, window_bounds = array<i64: 256, 256>}, {pipeline_mode = #tpu.pipeline_mode<synchronous>, transform_indices = @transform_2, window_bounds = array<i64: 1, 256>}, {pipeline_mode = #tpu.pipeline_mode<synchronous>, transform_indices = @transform_3, window_bounds = array<i64: 256, 256>}, {pipeline_mode = #tpu.pipeline_mode<synchronous>, transform_indices = @transform_4, window_bounds = array<i64: 1, 256>}, {transform_indices = @transform_5, window_bounds = array<i64: 256, 256>}]} {
    %c0 = arith.constant 0 : index
    %c0_0 = arith.constant 0 : index
    %0 = vector.load %arg1[%c0, %c0_0] : memref<256x256xf32, #tpu.memory_space<vmem>>, vector<256x256xf32>
    %1 = arith.truncf %0 : vector<256x256xf32> to vector<256x256xbf16>
    %c0_1 = arith.constant 0 : index
    %c0_2 = arith.constant 0 : index
    %2 = vector.load %arg2[%c0_1, %c0_2] : memref<256x256xbf16, #tpu.memory_space<vmem>>, vector<256x256xbf16>
    %cst = arith.constant dense<0.000000e+00> : vector<256x256xf32>
    %3 = tpu.matmul %1, %2, %cst {dimension_numbers = #tpu.dot_dimension_numbers<[1], [0], [0], [1], [0, 0, 1, 1], [], []>} : vector<256x256xbf16>, vector<256x256xbf16>, vector<256x256xf32> -> vector<256x256xf32>
    %c0_3 = arith.constant 0 : index
    %c0_4 = arith.constant 0 : index
    %4 = vector.load %arg3[%c0_3, %c0_4] : memref<1x256xf32, #tpu.memory_space<vmem>>, vector<1x256xf32>
    %5 = vector.broadcast %4 : vector<1x256xf32> to vector<256x256xf32>
    %6 = arith.addf %3, %5 : vector<256x256xf32>
    %cst_5 = arith.constant 0.000000e+00 : f32
    %7 = vector.broadcast %cst_5 : f32 to vector<256x256xf32>
    %8 = arith.maximumf %6, %7 : vector<256x256xf32>
    %9 = arith.truncf %8 : vector<256x256xf32> to vector<256x256xbf16>
    %c0_6 = arith.constant 0 : index
    %c0_7 = arith.constant 0 : index
    %10 = vector.load %arg4[%c0_6, %c0_7] : memref<256x256xbf16, #tpu.memory_space<vmem>>, vector<256x256xbf16>
    %cst_8 = arith.constant dense<0.000000e+00> : vector<256x256xf32>
    %11 = tpu.matmul %9, %10, %cst_8 {dimension_numbers = #tpu.dot_dimension_numbers<[1], [0], [0], [1], [0, 0, 1, 1], [], []>} : vector<256x256xbf16>, vector<256x256xbf16>, vector<256x256xf32> -> vector<256x256xf32>
    %c0_9 = arith.constant 0 : index
    %c0_10 = arith.constant 0 : index
    %12 = vector.load %arg5[%c0_9, %c0_10] : memref<1x256xf32, #tpu.memory_space<vmem>>, vector<1x256xf32>
    %13 = vector.broadcast %12 : vector<1x256xf32> to vector<256x256xf32>
    %14 = arith.addf %11, %13 : vector<256x256xf32>
    %15 = arith.addf %14, %0 : vector<256x256xf32>
    %c0_11 = arith.constant 0 : index
    %c0_12 = arith.constant 0 : index
    %16 = vector.load %arg6[%c0_11, %c0_12] : memref<256x256xf32, #tpu.memory_space<vmem>>, vector<256x256xf32>
    tpu.vector_store %arg6[%c0_11, %c0_12], %15 {strides = array<i32>} : memref<256x256xf32, #tpu.memory_space<vmem>>, vector<256x256xf32>,
    return
  }
  func.func @transform_0(%arg0: i32) -> (i32, i32) {
    %c0_i32 = arith.constant 0 : i32
    %c0_i32_0 = arith.constant 0 : i32
    return %arg0, %c0_i32 : i32, i32
  }
  func.func @transform_1(%arg0: i32) -> (i32, i32) {
    %c0_i32 = arith.constant 0 : i32
    %c0_i32_0 = arith.constant 0 : i32
    %c0_i32_1 = arith.constant 0 : i32
    return %c0_i32, %c0_i32_0 : i32, i32
  }
  func.func @transform_2(%arg0: i32) -> (i32, i32) {
    %c0_i32 = arith.constant 0 : i32
    %c0_i32_0 = arith.constant 0 : i32
    %c0_i32_1 = arith.constant 0 : i32
    return %c0_i32, %c0_i32_0 : i32, i32
  }
  func.func @transform_3(%arg0: i32) -> (i32, i32) {
    %c0_i32 = arith.constant 0 : i32
    %c0_i32_0 = arith.constant 0 : i32
    %c0_i32_1 = arith.constant 0 : i32
    return %c0_i32, %c0_i32_0 : i32, i32
  }
  func.func @transform_4(%arg0: i32) -> (i32, i32) {
    %c0_i32 = arith.constant 0 : i32
    %c0_i32_0 = arith.constant 0 : i32
    %c0_i32_1 = arith.constant 0 : i32
    return %c0_i32, %c0_i32_0 : i32, i32
  }
  func.func @transform_5(%arg0: i32) -> (i32, i32) {
    %c0_i32 = arith.constant 0 : i32
    %c0_i32_0 = arith.constant 0 : i32
    return %arg0, %c0_i32 : i32, i32
  }
}

</mosaic_0001>

<llo_original>
// kernel: tpu_custom_call.1
$region0: #{tpu_custom_call.1}
  #allocation0 [shape = 'u32[]', space=smem, size = 0x4, offset = 0x4, fixed_abs, tag = 'smem constant byte address 0x4 - core index']
  #allocation1 [shape = 'u32[144,128]{1,0:T(1,128)}', space=vmem, size = 0x12000, scoped, tag = 'internal scratch']
  %s0 = inlined_call_operand.hbm [shape: f32[256,256], index: 0, kind: input, shape index: {}]
  %s1 = inlined_call_operand.hbm [shape: bf16[256,256], index: 1, kind: input, shape index: {}]
  %s2 = inlined_call_operand.vmem [shape: f32[1,256], index: 2, kind: input, shape index: {}]
  %s3 = inlined_call_operand.hbm [shape: bf16[256,256], index: 3, kind: input, shape index: {}]
  %s4 = inlined_call_operand.vmem [shape: f32[1,256], index: 4, kind: input, shape index: {}]
  %s5 = inlined_call_operand.hbm [shape: f32[256,256], index: 5, kind: output, shape index: {}]
  %s6 = sld [smem:[#allocation0]]
  $region42: #{tpu_custom_call.1} parent=0
    _
  %s8 = ssub.s32 1, %s6
  %s9 = scalar_select 0, %s8, %s6
  $region1: #{tpu_custom_call.1} parent=0
    #allocation2 [shape = 'u8[262144]{0}', space=vmem, size = 0x40000, scoped, tag = 'input window, operand 0, single buffered']
    #allocation3 [shape = 's32[1]{0}', space=sflag, size = 0x4, scoped, tag = 'scoped memory for tpu_custom_call.1']
    #allocation4 [shape = 's32[1]{0}', space=sflag, size = 0x4, scoped, tag = 'scoped memory for tpu_custom_call.1']
    #allocation5 [shape = 'u8[131072]{0}', space=vmem, size = 0x20000, scoped, tag = 'input window, operand 1, single buffered']
    #allocation6 [shape = 's32[1]{0}', space=sflag, size = 0x4, scoped, tag = 'scoped memory for tpu_custom_call.1']
    #allocation7 [shape = 'u8[131072]{0}', space=vmem, size = 0x20000, scoped, tag = 'input window, operand 3, single buffered']
    #allocation8 [shape = 'u8[262144]{0}', space=vmem, size = 0x40000, scoped, tag = 'output window, operand 0, single buffered']
    %10 = vsyncpa [#allocation3], 0
    %11 = vsyncpa [#allocation6], 0
    %12 = vsyncpa [#allocation4], 0
    // Predicated region
    $region2: #{tpu_custom_call.1} parent=1 // pred_check
      _
    $region3: #{tpu_custom_call.1} parent=1 // pred_check_branch
      %14 = sbr.rel (0) target = $region5
    $region4: #{tpu_custom_call.1} parent=1 // pred_region
      %s16 = ssub.s32 8192, 8192
      %17 = vsyncadd [#allocation3], %s16
      %s18 = sshll.u32 [#allocation2], 4
      %s19 = int_to_ptr.vmem [resolvable:$true] %s18
      %24 = dma.hbm_to_vmem [thread:$0]  %s0, 8192, %s19, [#allocation3], 256, 256, 16
    $region5: #{tpu_custom_call.1} parent=1 // pred_fallthru
      _
    // Predicated region
    $region6: #{tpu_custom_call.1} parent=1 // pred_check
      _
    $region7: #{tpu_custom_call.1} parent=1 // pred_check_branch
      %26 = sbr.rel (0) target = $region9
    $region8: #{tpu_custom_call.1} parent=1 // pred_region
      %s28 = ssub.s32 4096, 4096
      %29 = vsyncadd [#allocation6], %s28
      %s30 = sshll.u32 [#allocation5], 4
      %s31 = int_to_ptr.vmem [resolvable:$true] %s30
      %36 = dma.hbm_to_vmem [thread:$0]  %s1, 4096, %s31, [#allocation6], 128, 128, 8
    $region9: #{tpu_custom_call.1} parent=1 // pred_fallthru
      _
    // Predicated region
    $region10: #{tpu_custom_call.1} parent=1 // pred_check
      _
    $region11: #{tpu_custom_call.1} parent=1 // pred_check_branch
      %38 = sbr.rel (0) target = $region13
    $region12: #{tpu_custom_call.1} parent=1 // pred_region
      _
    $region13: #{tpu_custom_call.1} parent=1 // pred_fallthru
      _
    // Predicated region
    $region14: #{tpu_custom_call.1} parent=1 // pred_check
      _
    $region15: #{tpu_custom_call.1} parent=1 // pred_check_branch
      %40 = sbr.rel (0) target = $region17
    $region16: #{tpu_custom_call.1} parent=1 // pred_region
      %s42 = ssub.s32 4096, 4096
      %43 = vsyncadd [#allocation6], %s42
      %s44 = sshll.u32 [#allocation7], 4
      %s45 = int_to_ptr.vmem [resolvable:$true] %s44
      %50 = dma.hbm_to_vmem [thread:$0]  %s3, 4096, %s45, [#allocation6], 128, 128, 8
    $region17: #{tpu_custom_call.1} parent=1 // pred_fallthru
      _
    // Predicated region
    $region18: #{tpu_custom_call.1} parent=1 // pred_check
      _
    $region19: #{tpu_custom_call.1} parent=1 // pred_check_branch
      %52 = sbr.rel (0) target = $region21
    $region20: #{tpu_custom_call.1} parent=1 // pred_region
      _
    $region21: #{tpu_custom_call.1} parent=1 // pred_fallthru
      _
    // Predicated region
    $region22: #{tpu_custom_call.1} parent=1 // pred_check
      _
    $region23: #{tpu_custom_call.1} parent=1 // pred_check_branch
      %54 = sbr.rel (0) target = $region25
    $region24: #{tpu_custom_call.1} parent=1 // pred_region
      %55 = dma.done [#allocation3], 8192
    $region25: #{tpu_custom_call.1} parent=1 // pred_fallthru
      _
    // Predicated region
    $region26: #{tpu_custom_call.1} parent=1 // pred_check
      _
    $region27: #{tpu_custom_call.1} parent=1 // pred_check_branch
      %57 = sbr.rel (0) target = $region29
    $region28: #{tpu_custom_call.1} parent=1 // pred_region
      %58 = dma.done [#allocation6], 4096
    $region29: #{tpu_custom_call.1} parent=1 // pred_fallthru
      _
    // Predicated region
    $region30: #{tpu_custom_call.1} parent=1 // pred_check
      _
    $region31: #{tpu_custom_call.1} parent=1 // pred_check_branch
      %60 = sbr.rel (0) target = $region33
    $region32: #{tpu_custom_call.1} parent=1 // pred_region
      %61 = dma.done [#allocation6], 4096
    $region33: #{tpu_custom_call.1} parent=1 // pred_fallthru
      _
    %v62 = vld [vmem:[#allocation2] sm:$0xff]
    %v63 = vld [vmem:[#allocation2 + $0x8] sm:$0xff]
    %v64 = vld [vmem:[#allocation2 + $0x10] sm:$0xff]
    %v65 = vld [vmem:[#allocation2 + $0x18] sm:$0xff]
    %v66 = vld [vmem:[#allocation2 + $0x20] sm:$0xff]
    %v67 = vld [vmem:[#allocation2 + $0x28] sm:$0xff]
    %v68 = vld [vmem:[#allocation2 + $0x30] sm:$0xff]
    %v69 = vld [vmem:[#allocation2 + $0x38] sm:$0xff]
    %v70 = vld [vmem:[#allocation2 + $0x40] sm:$0xff]
    %v71 = vld [vmem:[#allocation2 + $0x48] sm:$0xff]
    %v72 = vld [vmem:[#allocation2 + $0x50] sm:$0xff]
    %v73 = vld [vmem:[#allocation2 + $0x58] sm:$0xff]
    %v74 = vld [vmem:[#allocation2 + $0x60] sm:$0xff]
    %v75 = vld [vmem:[#allocation2 + $0x68] sm:$0xff]
    %v76 = vld [vmem:[#allocation2 + $0x70] sm:$0xff]
    %v77 = vld [vmem:[#allocation2 + $0x78] sm:$0xff]
    %v78 = vld [vmem:[#allocation2 + $0x80] sm:$0xff]
    %v79 = vld [vmem:[#allocation2 + $0x88] sm:$0xff]
    %v80 = vld [vmem:[#allocation2 + $0x90] sm:$0xff]
    %v81 = vld [vmem:[#allocation2 + $0x98] sm:$0xff]
    %v82 = vld [vmem:[#allocation2 + $0xa0] sm:$0xff]
    %v83 = vld [vmem:[#allocation2 + $0xa8] sm:$0xff]
    %v84 = vld [vmem:[#allocation2 + $0xb0] sm:$0xff]
    %v85 = vld [vmem:[#allocation2 + $0xb8] sm:$0xff]
    %v86 = vld [vmem:[#allocation2 + $0xc0] sm:$0xff]
    %v87 = vld [vmem:[#allocation2 + $0xc8] sm:$0xff]
    %v88 = vld [vmem:[#allocation2 + $0xd0] sm:$0xff]
    %v89 = vld [vmem:[#allocation2 + $0xd8] sm:$0xff]
    %v90 = vld [vmem:[#allocation2 + $0xe0] sm:$0xff]
    %v91 = vld [vmem:[#allocation2 + $0xe8] sm:$0xff]
    %v92 = vld [vmem:[#allocation2 + $0xf0] sm:$0xff]
    %v93 = vld [vmem:[#allocation2 + $0xf8] sm:$0xff]
    %v94 = vld [vmem:[#allocation2 + $0x100] sm:$0xff]
    %v95 = vld [vmem:[#allocation2 + $0x108] sm:$0xff]
    %v96 = vld [vmem:[#allocation2 + $0x110] sm:$0xff]
    %v97 = vld [vmem:[#allocation2 + $0x118] sm:$0xff]
    %v98 = vld [vmem:[#allocation2 + $0x120] sm:$0xff]
    %v99 = vld [vmem:[#allocation2 + $0x128] sm:$0xff]
    %v100 = vld [vmem:[#allocation2 + $0x130] sm:$0xff]
    %v101 = vld [vmem:[#allocation2 + $0x138] sm:$0xff]
    %v102 = vld [vmem:[#allocation2 + $0x140] sm:$0xff]
    %v103 = vld [vmem:[#allocation2 + $0x148] sm:$0xff]
    %v104 = vld [vmem:[#allocation2 + $0x150] sm:$0xff]
    %v105 = vld [vmem:[#allocation2 + $0x158] sm:$0xff]
    %v106 = vld [vmem:[#allocation2 + $0x160] sm:$0xff]
    %v107 = vld [vmem:[#allocation2 + $0x168] sm:$0xff]
    %v108 = vld [vmem:[#allocation2 + $0x170] sm:$0xff]
    %v109 = vld [vmem:[#allocation2 + $0x178] sm:$0xff]
    %v110 = vld [vmem:[#allocation2 + $0x180] sm:$0xff]
    %v111 = vld [vmem:[#allocation2 + $0x188] sm:$0xff]
    %v112 = vld [vmem:[#allocation2 + $0x190] sm:$0xff]
    %v113 = vld [vmem:[#allocation2 + $0x198] sm:$0xff]
    %v114 = vld [vmem:[#allocation2 + $0x1a0] sm:$0xff]
    %v115 = vld [vmem:[#allocation2 + $0x1a8] sm:$0xff]
    %v116 = vld [vmem:[#allocation2 + $0x1b0] sm:$0xff]
    %v117 = vld [vmem:[#allocation2 + $0x1b8] sm:$0xff]
    %v118 = vld [vmem:[#allocation2 + $0x1c0] sm:$0xff]
    %v119 = vld [vmem:[#allocation2 + $0x1c8] sm:$0xff]
    %v120 = vld [vmem:[#allocation2 + $0x1d0] sm:$0xff]
    %v121 = vld [vmem:[#allocation2 + $0x1d8] sm:$0xff]
    %v122 = vld [vmem:[#allocation2 + $0x1e0] sm:$0xff]
    %v123 = vld [vmem:[#allocation2 + $0x1e8] sm:$0xff]
    %v124 = vld [vmem:[#allocation2 + $0x1f0] sm:$0xff]
    %v125 = vld [vmem:[#allocation2 + $0x1f8] sm:$0xff]
    %v126 = vpack.c.bf16 %v64, %v62
    %v127 = vpack.c.bf16 %v65, %v63
    %v128 = vpack.c.bf16 %v68, %v66
    %v129 = vpack.c.bf16 %v69, %v67
    %v130 = vpack.c.bf16 %v72, %v70
    %v131 = vpack.c.bf16 %v73, %v71
    %v132 = vpack.c.bf16 %v76, %v74
    %v133 = vpack.c.bf16 %v77, %v75
    %v134 = vpack.c.bf16 %v80, %v78
    %v135 = vpack.c.bf16 %v81, %v79
    %v136 = vpack.c.bf16 %v84, %v82
    %v137 = vpack.c.bf16 %v85, %v83
    %v138 = vpack.c.bf16 %v88, %v86
    %v139 = vpack.c.bf16 %v89, %v87
    %v140 = vpack.c.bf16 %v92, %v90
    %v141 = vpack.c.bf16 %v93, %v91
    %v142 = vpack.c.bf16 %v96, %v94
    %v143 = vpack.c.bf16 %v97, %v95
    %v144 = vpack.c.bf16 %v100, %v98
    %v145 = vpack.c.bf16 %v101, %v99
    %v146 = vpack.c.bf16 %v104, %v102
    %v147 = vpack.c.bf16 %v105, %v103
    %v148 = vpack.c.bf16 %v108, %v106
    %v149 = vpack.c.bf16 %v109, %v107
    %v150 = vpack.c.bf16 %v112, %v110
    %v151 = vpack.c.bf16 %v113, %v111
    %v152 = vpack.c.bf16 %v116, %v114
    %v153 = vpack.c.bf16 %v117, %v115
    %v154 = vpack.c.bf16 %v120, %v118
    %v155 = vpack.c.bf16 %v121, %v119
    %v156 = vpack.c.bf16 %v124, %v122
    %v157 = vpack.c.bf16 %v125, %v123
    %v158 = vld [vmem:[#allocation5] sm:$0xff]
    %v159 = vld [vmem:[#allocation5 + $0x8] sm:$0xff]
    %v160 = vld [vmem:[#allocation5 + $0x10] sm:$0xff]
    %v161 = vld [vmem:[#allocation5 + $0x18] sm:$0xff]
    %v162 = vld [vmem:[#allocation5 + $0x20] sm:$0xff]
    %v163 = vld [vmem:[#allocation5 + $0x28] sm:$0xff]
    %v164 = vld [vmem:[#allocation5 + $0x30] sm:$0xff]
    %v165 = vld [vmem:[#allocation5 + $0x38] sm:$0xff]
    %v166 = vld [vmem:[#allocation5 + $0x40] sm:$0xff]
    %v167 = vld [vmem:[#allocation5 + $0x48] sm:$0xff]
    %v168 = vld [vmem:[#allocation5 + $0x50] sm:$0xff]
    %v169 = vld [vmem:[#allocation5 + $0x58] sm:$0xff]
    %v170 = vld [vmem:[#allocation5 + $0x60] sm:$0xff]
    %v171 = vld [vmem:[#allocation5 + $0x68] sm:$0xff]
    %v172 = vld [vmem:[#allocation5 + $0x70] sm:$0xff]
    %v173 = vld [vmem:[#allocation5 + $0x78] sm:$0xff]
    %v174 = vld [vmem:[#allocation5 + $0x80] sm:$0xff]
    %v175 = vld [vmem:[#allocation5 + $0x88] sm:$0xff]
    %v176 = vld [vmem:[#allocation5 + $0x90] sm:$0xff]
    %v177 = vld [vmem:[#allocation5 + $0x98] sm:$0xff]
    %v178 = vld [vmem:[#allocation5 + $0xa0] sm:$0xff]
    %v179 = vld [vmem:[#allocation5 + $0xa8] sm:$0xff]
    %v180 = vld [vmem:[#allocation5 + $0xb0] sm:$0xff]
    %v181 = vld [vmem:[#allocation5 + $0xb8] sm:$0xff]
    %v182 = vld [vmem:[#allocation5 + $0xc0] sm:$0xff]
    %v183 = vld [vmem:[#allocation5 + $0xc8] sm:$0xff]
    %v184 = vld [vmem:[#allocation5 + $0xd0] sm:$0xff]
    %v185 = vld [vmem:[#allocation5 + $0xd8] sm:$0xff]
    %v186 = vld [vmem:[#allocation5 + $0xe0] sm:$0xff]
    %v187 = vld [vmem:[#allocation5 + $0xe8] sm:$0xff]
    %v188 = vld [vmem:[#allocation5 + $0xf0] sm:$0xff]
    %v189 = vld [vmem:[#allocation5 + $0xf8] sm:$0xff]
    %v190 = vld [vmem:[%s2] sm:$0x3]
    %v192 = vlaneseq
    %v193 = vshrl.u32 %v192, 7
    %v194 = vsub.s32 0, %v193
    %v195 = vrot.slane %v190, %v194
    %v196 = vlaneseq
    %v197 = vshrl.u32 %v196, 7
    %v198 = vsub.s32 1, %v197
    %v199 = vrot.slane %v190, %v198
    %v234 = vunpack.c.l.b16 %v158
    %v235 = vunpack.c.h.b16 %v158
    %v236 = vunpack.c.l.b16 %v159
    %v237 = vunpack.c.h.b16 %v159
    %v238 = vunpack.c.l.b16 %v160
    %v239 = vunpack.c.h.b16 %v160
    %v240 = vunpack.c.l.b16 %v161
    %v241 = vunpack.c.h.b16 %v161
    %v242 = vunpack.c.l.b16 %v162
    %v243 = vunpack.c.h.b16 %v162
    %v244 = vunpack.c.l.b16 %v163
    %v245 = vunpack.c.h.b16 %v163
    %v246 = vunpack.c.l.b16 %v164
    %v247 = vunpack.c.h.b16 %v164
    %v248 = vunpack.c.l.b16 %v165
    %v249 = vunpack.c.h.b16 %v165
    %v250 = vunpack.c.l.b16 %v166
    %v251 = vunpack.c.h.b16 %v166
    %v252 = vunpack.c.l.b16 %v167
    %v253 = vunpack.c.h.b16 %v167
    %v254 = vunpack.c.l.b16 %v168
    %v255 = vunpack.c.h.b16 %v168
    %v256 = vunpack.c.l.b16 %v169
    %v257 = vunpack.c.h.b16 %v169
    %v258 = vunpack.c.l.b16 %v170
    %v259 = vunpack.c.h.b16 %v170
    %v260 = vunpack.c.l.b16 %v171
    %v261 = vunpack.c.h.b16 %v171
    %v262 = vunpack.c.l.b16 %v172
    %v263 = vunpack.c.h.b16 %v172
    %v264 = vunpack.c.l.b16 %v173
    %v265 = vunpack.c.h.b16 %v173
    %v266 = vunpack.c.l.b16 %v174
    %v267 = vunpack.c.h.b16 %v174
    %v268 = vunpack.c.l.b16 %v175
    %v269 = vunpack.c.h.b16 %v175
    %v270 = vunpack.c.l.b16 %v176
    %v271 = vunpack.c.h.b16 %v176
    %v272 = vunpack.c.l.b16 %v177
    %v273 = vunpack.c.h.b16 %v177
    %v274 = vunpack.c.l.b16 %v178
    %v275 = vunpack.c.h.b16 %v178
    %v276 = vunpack.c.l.b16 %v179
    %v277 = vunpack.c.h.b16 %v179
    %v278 = vunpack.c.l.b16 %v180
    %v279 = vunpack.c.h.b16 %v180
    %v280 = vunpack.c.l.b16 %v181
    %v281 = vunpack.c.h.b16 %v181
    %v282 = vunpack.c.l.b16 %v182
    %v283 = vunpack.c.h.b16 %v182
    %v284 = vunpack.c.l.b16 %v183
    %v285 = vunpack.c.h.b16 %v183
    %v286 = vunpack.c.l.b16 %v184
    %v287 = vunpack.c.h.b16 %v184
    %v288 = vunpack.c.l.b16 %v185
    %v289 = vunpack.c.h.b16 %v185
    %v290 = vunpack.c.l.b16 %v186
    %v291 = vunpack.c.h.b16 %v186
    %v292 = vunpack.c.l.b16 %v187
    %v293 = vunpack.c.h.b16 %v187
    %v294 = vunpack.c.l.b16 %v188
    %v295 = vunpack.c.h.b16 %v188
    %v296 = vunpack.c.l.b16 %v189
    %v297 = vunpack.c.h.b16 %v189
    %v298 = vpack.c.b16 %v236, %v234
    %v299 = vpack.c.b16 %v237, %v235
    %v300 = vpack.c.b16 %v240, %v238
    %v301 = vpack.c.b16 %v241, %v239
    %v302 = vpack.c.b16 %v244, %v242
    %v303 = vpack.c.b16 %v245, %v243
    %v304 = vpack.c.b16 %v248, %v246
    %v305 = vpack.c.b16 %v249, %v247
    %v306 = vpack.c.b16 %v252, %v250
    %v307 = vpack.c.b16 %v253, %v251
    %v308 = vpack.c.b16 %v256, %v254
    %v309 = vpack.c.b16 %v257, %v255
    %v310 = vpack.c.b16 %v260, %v258
    %v311 = vpack.c.b16 %v261, %v259
    %v312 = vpack.c.b16 %v264, %v262
    %v313 = vpack.c.b16 %v265, %v263
    %v314 = vpack.c.b16 %v268, %v266
    %v315 = vpack.c.b16 %v269, %v267
    %v316 = vpack.c.b16 %v272, %v270
    %v317 = vpack.c.b16 %v273, %v271
    %v318 = vpack.c.b16 %v276, %v274
    %v319 = vpack.c.b16 %v277, %v275
    %v320 = vpack.c.b16 %v280, %v278
    %v321 = vpack.c.b16 %v281, %v279
    %v322 = vpack.c.b16 %v284, %v282
    %v323 = vpack.c.b16 %v285, %v283
    %v324 = vpack.c.b16 %v288, %v286
    %v325 = vpack.c.b16 %v289, %v287
    %v326 = vpack.c.b16 %v292, %v290
    %v327 = vpack.c.b16 %v293, %v291
    %v328 = vpack.c.b16 %v296, %v294
    %v329 = vpack.c.b16 %v297, %v295
    %362 = vmatprep.subr.bf16.mxu0 %v313
    %363 = vmatpush1.bf16.msra.mxu0 %v312
    %364 = vmatprep.subr.bf16.mxu0 %v311
    %365 = vmatpush1.bf16.msra.mxu0 %v310
    %366 = vmatprep.subr.bf16.mxu0 %v309
    %367 = vmatpush1.bf16.msra.mxu0 %v308
    %368 = vmatprep.subr.bf16.mxu0 %v307
    %369 = vmatpush1.bf16.msra.mxu0 %v306
    %370 = vmatprep.subr.bf16.mxu0 %v305
    %371 = vmatpush1.bf16.msra.mxu0 %v304
    %372 = vmatprep.subr.bf16.mxu0 %v303
    %373 = vmatpush1.bf16.msra.mxu0 %v302
    %374 = vmatprep.subr.bf16.mxu0 %v301
    %375 = vmatpush1.bf16.msra.mxu0 %v300
    %376 = vmatprep.subr.bf16.mxu0 %v299
    %377 = vmatpush1.bf16.msra.mxu0 %v298
    %378 = vmatprep.subr.bf16.mxu0 %v329
    %379 = vmatpush2.bf16.msra.mxu0 %v328
    %380 = vmatprep.subr.bf16.mxu0 %v327
    %381 = vmatpush2.bf16.msra.mxu0 %v326
    %382 = vmatprep.subr.bf16.mxu0 %v325
    %383 = vmatpush2.bf16.msra.mxu0 %v324
    %384 = vmatprep.subr.bf16.mxu0 %v323
    %385 = vmatpush2.bf16.msra.mxu0 %v322
    %386 = vmatprep.subr.bf16.mxu0 %v321
    %387 = vmatpush2.bf16.msra.mxu0 %v320
    %388 = vmatprep.subr.bf16.mxu0 %v319
    %389 = vmatpush2.bf16.msra.mxu0 %v318
    %390 = vmatprep.subr.bf16.mxu0 %v317
    %391 = vmatpush2.bf16.msra.mxu0 %v316
    %392 = vmatprep.subr.bf16.mxu0 %v315
    %393 = vmatpush2.bf16.msra.mxu0 %v314
    %394 = vmatprep.mubr.bf16.mxu0 %v127
    %395 = vmatmul.mubr.bf16.gmra.mxu0 %v126
    %v396 = vpop.f32.mrf.mxu0
    %v397 = vadd.f32 %v195, %v396
    %v398 = vpop.f32.mrf.mxu0
    %v399 = vadd.f32 %v199, %v398
    %v400 = vpop.f32.mrf.mxu0
    %v401 = vadd.f32 %v195, %v400
    %v402 = vpop.f32.mrf.mxu0
    %v403 = vadd.f32 %v199, %v402
    %404 = vmatprep.mubr.bf16.mxu0 %v129
    %405 = vmatmul.mubr.bf16.gmra.mxu0 %v128
    %v406 = vpop.f32.mrf.mxu0
    %v407 = vadd.f32 %v195, %v406
    %v408 = vpop.f32.mrf.mxu0
    %v409 = vadd.f32 %v199, %v408
    %v410 = vpop.f32.mrf.mxu0
    %v411 = vadd.f32 %v195, %v410
    %v412 = vpop.f32.mrf.mxu0
    %v413 = vadd.f32 %v199, %v412
    %414 = vmatprep.mubr.bf16.mxu0 %v131
    %415 = vmatmul.mubr.bf16.gmra.mxu0 %v130
    %v416 = vpop.f32.mrf.mxu0
    %v417 = vadd.f32 %v195, %v416
    %v418 = vpop.f32.mrf.mxu0
    %v419 = vadd.f32 %v199, %v418
    %v420 = vpop.f32.mrf.mxu0
    %v421 = vadd.f32 %v195, %v420
    %v422 = vpop.f32.mrf.mxu0
    %v423 = vadd.f32 %v199, %v422
    %424 = vmatprep.mubr.bf16.mxu0 %v133
    %425 = vmatmul.mubr.bf16.gmra.mxu0 %v132
    %v426 = vpop.f32.mrf.mxu0
    %v427 = vadd.f32 %v195, %v426
    %v428 = vpop.f32.mrf.mxu0
    %v429 = vadd.f32 %v199, %v428
    %v430 = vpop.f32.mrf.mxu0
    %v431 = vadd.f32 %v195, %v430
    %v432 = vpop.f32.mrf.mxu0
    %v433 = vadd.f32 %v199, %v432
    %434 = vmatprep.mubr.bf16.mxu0 %v135
    %435 = vmatmul.mubr.bf16.gmra.mxu0 %v134
    %v436 = vpop.f32.mrf.mxu0
    %v437 = vadd.f32 %v195, %v436
    %v438 = vpop.f32.mrf.mxu0
    %v439 = vadd.f32 %v199, %v438
    %v440 = vpop.f32.mrf.mxu0
    %v441 = vadd.f32 %v195, %v440
    %v442 = vpop.f32.mrf.mxu0
    %v443 = vadd.f32 %v199, %v442
    %444 = vmatprep.mubr.bf16.mxu0 %v137
    %445 = vmatmul.mubr.bf16.gmra.mxu0 %v136
    %v446 = vpop.f32.mrf.mxu0
    %v447 = vadd.f32 %v195, %v446
    %v448 = vpop.f32.mrf.mxu0
    %v449 = vadd.f32 %v199, %v448
    %v450 = vpop.f32.mrf.mxu0
    %v451 = vadd.f32 %v195, %v450
    %v452 = vpop.f32.mrf.mxu0
    %v453 = vadd.f32 %v199, %v452
    %454 = vmatprep.mubr.bf16.mxu0 %v139
    %455 = vmatmul.mubr.bf16.gmra.mxu0 %v138
    %v456 = vpop.f32.mrf.mxu0
    %v457 = vadd.f32 %v195, %v456
    %v458 = vpop.f32.mrf.mxu0
    %v459 = vadd.f32 %v199, %v458
    %v460 = vpop.f32.mrf.mxu0
    %v461 = vadd.f32 %v195, %v460
    %v462 = vpop.f32.mrf.mxu0
    %v463 = vadd.f32 %v199, %v462
    %464 = vmatprep.mubr.bf16.mxu0 %v141
    %465 = vmatmul.mubr.bf16.gmra.mxu0 %v140
    %v466 = vpop.f32.mrf.mxu0
    %v467 = vadd.f32 %v195, %v466
    %v468 = vpop.f32.mrf.mxu0
    %v469 = vadd.f32 %v199, %v468
    %v470 = vpop.f32.mrf.mxu0
    %v471 = vadd.f32 %v195, %v470
    %v472 = vpop.f32.mrf.mxu0
    %v473 = vadd.f32 %v199, %v472
    %474 = vmatprep.mubr.bf16.mxu0 %v143
    %475 = vmatmul.mubr.bf16.gmra.mxu0 %v142
    %v476 = vpop.f32.mrf.mxu0
    %v477 = vadd.f32 %v195, %v476
    %v478 = vpop.f32.mrf.mxu0
    %v479 = vadd.f32 %v199, %v478
    %v480 = vpop.f32.mrf.mxu0
    %v481 = vadd.f32 %v195, %v480
    %v482 = vpop.f32.mrf.mxu0
    %v483 = vadd.f32 %v199, %v482
    %484 = vmatprep.mubr.bf16.mxu0 %v145
    %485 = vmatmul.mubr.bf16.gmra.mxu0 %v144
    %v486 = vpop.f32.mrf.mxu0
    %v487 = vadd.f32 %v195, %v486
    %v488 = vpop.f32.mrf.mxu0
    %v489 = vadd.f32 %v199, %v488
    %v490 = vpop.f32.mrf.mxu0
    %v491 = vadd.f32 %v195, %v490
    %v492 = vpop.f32.mrf.mxu0
    %v493 = vadd.f32 %v199, %v492
    %494 = vmatprep.mubr.bf16.mxu0 %v147
    %495 = vmatmul.mubr.bf16.gmra.mxu0 %v146
    %v496 = vpop.f32.mrf.mxu0
    %v497 = vadd.f32 %v195, %v496
    %v498 = vpop.f32.mrf.mxu0
    %v499 = vadd.f32 %v199, %v498
    %v500 = vpop.f32.mrf.mxu0
    %v501 = vadd.f32 %v195, %v500
    %v502 = vpop.f32.mrf.mxu0
    %v503 = vadd.f32 %v199, %v502
    %504 = vmatprep.mubr.bf16.mxu0 %v149
    %505 = vmatmul.mubr.bf16.gmra.mxu0 %v148
    %v506 = vpop.f32.mrf.mxu0
    %v507 = vadd.f32 %v195, %v506
    %v508 = vpop.f32.mrf.mxu0
    %v509 = vadd.f32 %v199, %v508
    %v510 = vpop.f32.mrf.mxu0
    %v511 = vadd.f32 %v195, %v510
    %v512 = vpop.f32.mrf.mxu0
    %v513 = vadd.f32 %v199, %v512
    %514 = vmatprep.mubr.bf16.mxu0 %v151
    %515 = vmatmul.mubr.bf16.gmra.mxu0 %v150
    %v516 = vpop.f32.mrf.mxu0
    %v517 = vadd.f32 %v195, %v516
    %v518 = vpop.f32.mrf.mxu0
    %v519 = vadd.f32 %v199, %v518
    %v520 = vpop.f32.mrf.mxu0
    %v521 = vadd.f32 %v195, %v520
    %v522 = vpop.f32.mrf.mxu0
    %v523 = vadd.f32 %v199, %v522
    %524 = vmatprep.mubr.bf16.mxu0 %v153
    %525 = vmatmul.mubr.bf16.gmra.mxu0 %v152
    %v526 = vpop.f32.mrf.mxu0
    %v527 = vadd.f32 %v195, %v526
    %v528 = vpop.f32.mrf.mxu0
    %v529 = vadd.f32 %v199, %v528
    %v530 = vpop.f32.mrf.mxu0
    %v531 = vadd.f32 %v195, %v530
    %v532 = vpop.f32.mrf.mxu0
    %v533 = vadd.f32 %v199, %v532
    %534 = vmatprep.mubr.bf16.mxu0 %v155
    %535 = vmatmul.mubr.bf16.gmra.mxu0 %v154
    %v536 = vpop.f32.mrf.mxu0
    %v537 = vadd.f32 %v195, %v536
    %v538 = vpop.f32.mrf.mxu0
    %v539 = vadd.f32 %v199, %v538
    %v540 = vpop.f32.mrf.mxu0
    %v541 = vadd.f32 %v195, %v540
    %v542 = vpop.f32.mrf.mxu0
    %v543 = vadd.f32 %v199, %v542
    %544 = vmatprep.mubr.bf16.mxu0 %v157
    %545 = vmatmul.mubr.bf16.gmra.mxu0 %v156
    %v546 = vpop.f32.mrf.mxu0
    %v547 = vadd.f32 %v195, %v546
    %v548 = vpop.f32.mrf.mxu0
    %v549 = vadd.f32 %v199, %v548
    %v550 = vpop.f32.mrf.mxu0
    %v551 = vadd.f32 %v195, %v550
    %v552 = vpop.f32.mrf.mxu0
    %v553 = vadd.f32 %v199, %v552
    %554 = vdwg.mxu0
    %v555 = vmax.f32 %v397, 0.0
    %v556 = vmax.f32 %v399, 0.0
    %v557 = vmax.f32 %v401, 0.0
    %v558 = vmax.f32 %v403, 0.0
    %v559 = vmax.f32 %v407, 0.0
    %v560 = vmax.f32 %v409, 0.0
    %v561 = vmax.f32 %v411, 0.0
    %v562 = vmax.f32 %v413, 0.0
    %v563 = vmax.f32 %v417, 0.0
    %v564 = vmax.f32 %v419, 0.0
    %v565 = vmax.f32 %v421, 0.0
    %v566 = vmax.f32 %v423, 0.0
    %v567 = vmax.f32 %v427, 0.0
    %v568 = vmax.f32 %v429, 0.0
    %v569 = vmax.f32 %v431, 0.0
    %v570 = vmax.f32 %v433, 0.0
    %v571 = vmax.f32 %v437, 0.0
    %v572 = vmax.f32 %v439, 0.0
    %v573 = vmax.f32 %v441, 0.0
    %v574 = vmax.f32 %v443, 0.0
    %v575 = vmax.f32 %v447, 0.0
    %v576 = vmax.f32 %v449, 0.0
    %v577 = vmax.f32 %v451, 0.0
    %v578 = vmax.f32 %v453, 0.0
    %v579 = vmax.f32 %v457, 0.0
    %v580 = vmax.f32 %v459, 0.0
    %v581 = vmax.f32 %v461, 0.0
    %v582 = vmax.f32 %v463, 0.0
    %v583 = vmax.f32 %v467, 0.0
    %v584 = vmax.f32 %v469, 0.0
    %v585 = vmax.f32 %v471, 0.0
    %v586 = vmax.f32 %v473, 0.0
    %v587 = vmax.f32 %v477, 0.0
    %v588 = vmax.f32 %v479, 0.0
    %v589 = vmax.f32 %v481, 0.0
    %v590 = vmax.f32 %v483, 0.0
    %v591 = vmax.f32 %v487, 0.0
    %v592 = vmax.f32 %v489, 0.0
    %v593 = vmax.f32 %v491, 0.0
    %v594 = vmax.f32 %v493, 0.0
    %v595 = vmax.f32 %v497, 0.0
    %v596 = vmax.f32 %v499, 0.0
    %v597 = vmax.f32 %v501, 0.0
    %v598 = vmax.f32 %v503, 0.0
    %v599 = vmax.f32 %v507, 0.0
    %v600 = vmax.f32 %v509, 0.0
    %v601 = vmax.f32 %v511, 0.0
    %v602 = vmax.f32 %v513, 0.0
    %v603 = vmax.f32 %v517, 0.0
    %v604 = vmax.f32 %v519, 0.0
    %v605 = vmax.f32 %v521, 0.0
    %v606 = vmax.f32 %v523, 0.0
    %v607 = vmax.f32 %v527, 0.0
    %v608 = vmax.f32 %v529, 0.0
    %v609 = vmax.f32 %v531, 0.0
    %v610 = vmax.f32 %v533, 0.0
    %v611 = vmax.f32 %v537, 0.0
    %v612 = vmax.f32 %v539, 0.0
    %v613 = vmax.f32 %v541, 0.0
    %v614 = vmax.f32 %v543, 0.0
    %v615 = vmax.f32 %v547, 0.0
    %v616 = vmax.f32 %v549, 0.0
    %v617 = vmax.f32 %v551, 0.0
    %v618 = vmax.f32 %v553, 0.0
    %v619 = vpack.c.bf16 %v557, %v555
    %v620 = vpack.c.bf16 %v558, %v556
    %v621 = vpack.c.bf16 %v561, %v559
    %v622 = vpack.c.bf16 %v562, %v560
    %v623 = vpack.c.bf16 %v565, %v563
    %v624 = vpack.c.bf16 %v566, %v564
    %v625 = vpack.c.bf16 %v569, %v567
    %v626 = vpack.c.bf16 %v570, %v568
    %v627 = vpack.c.bf16 %v573, %v571
    %v628 = vpack.c.bf16 %v574, %v572
    %v629 = vpack.c.bf16 %v577, %v575
    %v630 = vpack.c.bf16 %v578, %v576
    %v631 = vpack.c.bf16 %v581, %v579
    %v632 = vpack.c.bf16 %v582, %v580
    %v633 = vpack.c.bf16 %v585, %v583
    %v634 = vpack.c.bf16 %v586, %v584
    %v635 = vpack.c.bf16 %v589, %v587
    %v636 = vpack.c.bf16 %v590, %v588
    %v637 = vpack.c.bf16 %v593, %v591
    %v638 = vpack.c.bf16 %v594, %v592
    %v639 = vpack.c.bf16 %v597, %v595
    %v640 = vpack.c.bf16 %v598, %v596
    %v641 = vpack.c.bf16 %v601, %v599
    %v642 = vpack.c.bf16 %v602, %v600
    %v643 = vpack.c.bf16 %v605, %v603
    %v644 = vpack.c.bf16 %v606, %v604
    %v645 = vpack.c.bf16 %v609, %v607
    %v646 = vpack.c.bf16 %v610, %v608
    %v647 = vpack.c.bf16 %v613, %v611
    %v648 = vpack.c.bf16 %v614, %v612
    %v649 = vpack.c.bf16 %v617, %v615
    %v650 = vpack.c.bf16 %v618, %v616
    %v651 = vld [vmem:[#allocation7] sm:$0xff]
    %v652 = vld [vmem:[#allocation7 + $0x8] sm:$0xff]
    %v653 = vld [vmem:[#allocation7 + $0x10] sm:$0xff]
    %v654 = vld [vmem:[#allocation7 + $0x18] sm:$0xff]
    %v655 = vld [vmem:[#allocation7 + $0x20] sm:$0xff]
    %v656 = vld [vmem:[#allocation7 + $0x28] sm:$0xff]
    %v657 = vld [vmem:[#allocation7 + $0x30] sm:$0xff]
    %v658 = vld [vmem:[#allocation7 + $0x38] sm:$0xff]
    %v659 = vld [vmem:[#allocation7 + $0x40] sm:$0xff]
    %v660 = vld [vmem:[#allocation7 + $0x48] sm:$0xff]
    %v661 = vld [vmem:[#allocation7 + $0x50] sm:$0xff]
    %v662 = vld [vmem:[#allocation7 + $0x58] sm:$0xff]
    %v663 = vld [vmem:[#allocation7 + $0x60] sm:$0xff]
    %v664 = vld [vmem:[#allocation7 + $0x68] sm:$0xff]
    %v665 = vld [vmem:[#allocation7 + $0x70] sm:$0xff]
    %v666 = vld [vmem:[#allocation7 + $0x78] sm:$0xff]
    %v667 = vld [vmem:[#allocation7 + $0x80] sm:$0xff]
    %v668 = vld [vmem:[#allocation7 + $0x88] sm:$0xff]
    %v669 = vld [vmem:[#allocation7 + $0x90] sm:$0xff]
    %v670 = vld [vmem:[#allocation7 + $0x98] sm:$0xff]
    %v671 = vld [vmem:[#allocation7 + $0xa0] sm:$0xff]
    %v672 = vld [vmem:[#allocation7 + $0xa8] sm:$0xff]
    %v673 = vld [vmem:[#allocation7 + $0xb0] sm:$0xff]
    %v674 = vld [vmem:[#allocation7 + $0xb8] sm:$0xff]
    %v675 = vld [vmem:[#allocation7 + $0xc0] sm:$0xff]
    %v676 = vld [vmem:[#allocation7 + $0xc8] sm:$0xff]
    %v677 = vld [vmem:[#allocation7 + $0xd0] sm:$0xff]
    %v678 = vld [vmem:[#allocation7 + $0xd8] sm:$0xff]
    %v679 = vld [vmem:[#allocation7 + $0xe0] sm:$0xff]
    %v680 = vld [vmem:[#allocation7 + $0xe8] sm:$0xff]
    %v681 = vld [vmem:[#allocation7 + $0xf0] sm:$0xff]
    %v682 = vld [vmem:[#allocation7 + $0xf8] sm:$0xff]
    %v683 = vld [vmem:[%s4] sm:$0x3]
    %v685 = vlaneseq
    %v686 = vshrl.u32 %v685, 7
    %v687 = vsub.s32 0, %v686
    %v688 = vrot.slane %v683, %v687
    %v689 = vlaneseq
    %v690 = vshrl.u32 %v689, 7
    %v691 = vsub.s32 1, %v690
    %v692 = vrot.slane %v683, %v691
    %v727 = vunpack.c.l.b16 %v651
    %v728 = vunpack.c.h.b16 %v651
    %v729 = vunpack.c.l.b16 %v652
    %v730 = vunpack.c.h.b16 %v652
    %v731 = vunpack.c.l.b16 %v653
    %v732 = vunpack.c.h.b16 %v653
    %v733 = vunpack.c.l.b16 %v654
    %v734 = vunpack.c.h.b16 %v654
    %v735 = vunpack.c.l.b16 %v655
    %v736 = vunpack.c.h.b16 %v655
    %v737 = vunpack.c.l.b16 %v656
    %v738 = vunpack.c.h.b16 %v656
    %v739 = vunpack.c.l.b16 %v657
    %v740 = vunpack.c.h.b16 %v657
    %v741 = vunpack.c.l.b16 %v658
    %v742 = vunpack.c.h.b16 %v658
    %v743 = vunpack.c.l.b16 %v659
    %v744 = vunpack.c.h.b16 %v659
    %v745 = vunpack.c.l.b16 %v660
    %v746 = vunpack.c.h.b16 %v660
    %v747 = vunpack.c.l.b16 %v661
    %v748 = vunpack.c.h.b16 %v661
    %v749 = vunpack.c.l.b16 %v662
    %v750 = vunpack.c.h.b16 %v662
    %v751 = vunpack.c.l.b16 %v663
    %v752 = vunpack.c.h.b16 %v663
    %v753 = vunpack.c.l.b16 %v664
    %v754 = vunpack.c.h.b16 %v664
    %v755 = vunpack.c.l.b16 %v665
    %v756 = vunpack.c.h.b16 %v665
    %v757 = vunpack.c.l.b16 %v666
    %v758 = vunpack.c.h.b16 %v666
    %v759 = vunpack.c.l.b16 %v667
    %v760 = vunpack.c.h.b16 %v667
    %v761 = vunpack.c.l.b16 %v668
    %v762 = vunpack.c.h.b16 %v668
    %v763 = vunpack.c.l.b16 %v669
    %v764 = vunpack.c.h.b16 %v669
    %v765 = vunpack.c.l.b16 %v670
    %v766 = vunpack.c.h.b16 %v670
    %v767 = vunpack.c.l.b16 %v671
    %v768 = vunpack.c.h.b16 %v671
    %v769 = vunpack.c.l.b16 %v672
    %v770 = vunpack.c.h.b16 %v672
    %v771 = vunpack.c.l.b16 %v673
    %v772 = vunpack.c.h.b16 %v673
    %v773 = vunpack.c.l.b16 %v674
    %v774 = vunpack.c.h.b16 %v674
    %v775 = vunpack.c.l.b16 %v675
    %v776 = vunpack.c.h.b16 %v675
    %v777 = vunpack.c.l.b16 %v676
    %v778 = vunpack.c.h.b16 %v676
    %v779 = vunpack.c.l.b16 %v677
    %v780 = vunpack.c.h.b16 %v677
    %v781 = vunpack.c.l.b16 %v678
    %v782 = vunpack.c.h.b16 %v678
    %v783 = vunpack.c.l.b16 %v679
    %v784 = vunpack.c.h.b16 %v679
    %v785 = vunpack.c.l.b16 %v680
    %v786 = vunpack.c.h.b16 %v680
    %v787 = vunpack.c.l.b16 %v681
    %v788 = vunpack.c.h.b16 %v681
    %v789 = vunpack.c.l.b16 %v682
    %v790 = vunpack.c.h.b16 %v682
    %v791 = vpack.c.b16 %v729, %v727
    %v792 = vpack.c.b16 %v730, %v728
    %v793 = vpack.c.b16 %v733, %v731
    %v794 = vpack.c.b16 %v734, %v732
    %v795 = vpack.c.b16 %v737, %v735
    %v796 = vpack.c.b16 %v738, %v736
    %v797 = vpack.c.b16 %v741, %v739
    %v798 = vpack.c.b16 %v742, %v740
    %v799 = vpack.c.b16 %v745, %v743
    %v800 = vpack.c.b16 %v746, %v744
    %v801 = vpack.c.b16 %v749, %v747
    %v802 = vpack.c.b16 %v750, %v748
    %v803 = vpack.c.b16 %v753, %v751
    %v804 = vpack.c.b16 %v754, %v752
    %v805 = vpack.c.b16 %v757, %v755
    %v806 = vpack.c.b16 %v758, %v756
    %v807 = vpack.c.b16 %v761, %v759
    %v808 = vpack.c.b16 %v762, %v760
    %v809 = vpack.c.b16 %v765, %v763
    %v810 = vpack.c.b16 %v766, %v764
    %v811 = vpack.c.b16 %v769, %v767
    %v812 = vpack.c.b16 %v770, %v768
    %v813 = vpack.c.b16 %v773, %v771
    %v814 = vpack.c.b16 %v774, %v772
    %v815 = vpack.c.b16 %v777, %v775
    %v816 = vpack.c.b16 %v778, %v776
    %v817 = vpack.c.b16 %v781, %v779
    %v818 = vpack.c.b16 %v782, %v780
    %v819 = vpack.c.b16 %v785, %v783
    %v820 = vpack.c.b16 %v786, %v784
    %v821 = vpack.c.b16 %v789, %v787
    %v822 = vpack.c.b16 %v790, %v788
    %855 = vmatprep.subr.bf16.mxu0 %v806
    %856 = vmatpush1.bf16.msra.mxu0 %v805
    %857 = vmatprep.subr.bf16.mxu0 %v804
    %858 = vmatpush1.bf16.msra.mxu0 %v803
    %859 = vmatprep.subr.bf16.mxu0 %v802
    %860 = vmatpush1.bf16.msra.mxu0 %v801
    %861 = vmatprep.subr.bf16.mxu0 %v800
    %862 = vmatpush1.bf16.msra.mxu0 %v799
    %863 = vmatprep.subr.bf16.mxu0 %v798
    %864 = vmatpush1.bf16.msra.mxu0 %v797
    %865 = vmatprep.subr.bf16.mxu0 %v796
    %866 = vmatpush1.bf16.msra.mxu0 %v795
    %867 = vmatprep.subr.bf16.mxu0 %v794
    %868 = vmatpush1.bf16.msra.mxu0 %v793
    %869 = vmatprep.subr.bf16.mxu0 %v792
    %870 = vmatpush1.bf16.msra.mxu0 %v791
    %871 = vmatprep.subr.bf16.mxu0 %v822
    %872 = vmatpush2.bf16.msra.mxu0 %v821
    %873 = vmatprep.subr.bf16.mxu0 %v820
    %874 = vmatpush2.bf16.msra.mxu0 %v819
    %875 = vmatprep.subr.bf16.mxu0 %v818
    %876 = vmatpush2.bf16.msra.mxu0 %v817
    %877 = vmatprep.subr.bf16.mxu0 %v816
    %878 = vmatpush2.bf16.msra.mxu0 %v815
    %879 = vmatprep.subr.bf16.mxu0 %v814
    %880 = vmatpush2.bf16.msra.mxu0 %v813
    %881 = vmatprep.subr.bf16.mxu0 %v812
    %882 = vmatpush2.bf16.msra.mxu0 %v811
    %883 = vmatprep.subr.bf16.mxu0 %v810
    %884 = vmatpush2.bf16.msra.mxu0 %v809
    %885 = vmatprep.subr.bf16.mxu0 %v808
    %886 = vmatpush2.bf16.msra.mxu0 %v807
    %887 = vmatprep.mubr.bf16.mxu0 %v620
    %888 = vmatmul.mubr.bf16.gmra.mxu0 %v619
    %v889 = vpop.f32.mrf.mxu0
    %v890 = vadd.f32 %v688, %v889
    %v891 = vpop.f32.mrf.mxu0
    %v892 = vadd.f32 %v692, %v891
    %v893 = vpop.f32.mrf.mxu0
    %v894 = vadd.f32 %v688, %v893
    %v895 = vpop.f32.mrf.mxu0
    %v896 = vadd.f32 %v692, %v895
    %897 = vmatprep.mubr.bf16.mxu0 %v622
    %898 = vmatmul.mubr.bf16.gmra.mxu0 %v621
    %v899 = vpop.f32.mrf.mxu0
    %v900 = vadd.f32 %v688, %v899
    %v901 = vpop.f32.mrf.mxu0
    %v902 = vadd.f32 %v692, %v901
    %v903 = vpop.f32.mrf.mxu0
    %v904 = vadd.f32 %v688, %v903
    %v905 = vpop.f32.mrf.mxu0
    %v906 = vadd.f32 %v692, %v905
    %907 = vmatprep.mubr.bf16.mxu0 %v624
    %908 = vmatmul.mubr.bf16.gmra.mxu0 %v623
    %v909 = vpop.f32.mrf.mxu0
    %v910 = vadd.f32 %v688, %v909
    %v911 = vpop.f32.mrf.mxu0
    %v912 = vadd.f32 %v692, %v911
    %v913 = vpop.f32.mrf.mxu0
    %v914 = vadd.f32 %v688, %v913
    %v915 = vpop.f32.mrf.mxu0
    %v916 = vadd.f32 %v692, %v915
    %917 = vmatprep.mubr.bf16.mxu0 %v626
    %918 = vmatmul.mubr.bf16.gmra.mxu0 %v625
    %v919 = vpop.f32.mrf.mxu0
    %v920 = vadd.f32 %v688, %v919
    %v921 = vpop.f32.mrf.mxu0
    %v922 = vadd.f32 %v692, %v921
    %v923 = vpop.f32.mrf.mxu0
    %v924 = vadd.f32 %v688, %v923
    %v925 = vpop.f32.mrf.mxu0
    %v926 = vadd.f32 %v692, %v925
    %927 = vmatprep.mubr.bf16.mxu0 %v628
    %928 = vmatmul.mubr.bf16.gmra.mxu0 %v627
    %v929 = vpop.f32.mrf.mxu0
    %v930 = vadd.f32 %v688, %v929
    %v931 = vpop.f32.mrf.mxu0
    %v932 = vadd.f32 %v692, %v931
    %v933 = vpop.f32.mrf.mxu0
    %v934 = vadd.f32 %v688, %v933
    %v935 = vpop.f32.mrf.mxu0
    %v936 = vadd.f32 %v692, %v935
    %937 = vmatprep.mubr.bf16.mxu0 %v630
    %938 = vmatmul.mubr.bf16.gmra.mxu0 %v629
    %v939 = vpop.f32.mrf.mxu0
    %v940 = vadd.f32 %v688, %v939
    %v941 = vpop.f32.mrf.mxu0
    %v942 = vadd.f32 %v692, %v941
    %v943 = vpop.f32.mrf.mxu0
    %v944 = vadd.f32 %v688, %v943
    %v945 = vpop.f32.mrf.mxu0
    %v946 = vadd.f32 %v692, %v945
    %947 = vmatprep.mubr.bf16.mxu0 %v632
    %948 = vmatmul.mubr.bf16.gmra.mxu0 %v631
    %v949 = vpop.f32.mrf.mxu0
    %v950 = vadd.f32 %v688, %v949
    %v951 = vpop.f32.mrf.mxu0
    %v952 = vadd.f32 %v692, %v951
    %v953 = vpop.f32.mrf.mxu0
    %v954 = vadd.f32 %v688, %v953
    %v955 = vpop.f32.mrf.mxu0
    %v956 = vadd.f32 %v692, %v955
    %957 = vmatprep.mubr.bf16.mxu0 %v634
    %958 = vmatmul.mubr.bf16.gmra.mxu0 %v633
    %v959 = vpop.f32.mrf.mxu0
    %v960 = vadd.f32 %v688, %v959
    %v961 = vpop.f32.mrf.mxu0
    %v962 = vadd.f32 %v692, %v961
    %v963 = vpop.f32.mrf.mxu0
    %v964 = vadd.f32 %v688, %v963
    %v965 = vpop.f32.mrf.mxu0
    %v966 = vadd.f32 %v692, %v965
    %967 = vmatprep.mubr.bf16.mxu0 %v636
    %968 = vmatmul.mubr.bf16.gmra.mxu0 %v635
    %v969 = vpop.f32.mrf.mxu0
    %v970 = vadd.f32 %v688, %v969
    %v971 = vpop.f32.mrf.mxu0
    %v972 = vadd.f32 %v692, %v971
    %v973 = vpop.f32.mrf.mxu0
    %v974 = vadd.f32 %v688, %v973
    %v975 = vpop.f32.mrf.mxu0
    %v976 = vadd.f32 %v692, %v975
    %977 = vmatprep.mubr.bf16.mxu0 %v638
    %978 = vmatmul.mubr.bf16.gmra.mxu0 %v637
    %v979 = vpop.f32.mrf.mxu0
    %v980 = vadd.f32 %v688, %v979
    %v981 = vpop.f32.mrf.mxu0
    %v982 = vadd.f32 %v692, %v981
    %v983 = vpop.f32.mrf.mxu0
    %v984 = vadd.f32 %v688, %v983
    %v985 = vpop.f32.mrf.mxu0
    %v986 = vadd.f32 %v692, %v985
    %987 = vmatprep.mubr.bf16.mxu0 %v640
    %988 = vmatmul.mubr.bf16.gmra.mxu0 %v639
    %v989 = vpop.f32.mrf.mxu0
    %v990 = vadd.f32 %v688, %v989
    %v991 = vpop.f32.mrf.mxu0
    %v992 = vadd.f32 %v692, %v991
    %v993 = vpop.f32.mrf.mxu0
    %v994 = vadd.f32 %v688, %v993
    %v995 = vpop.f32.mrf.mxu0
    %v996 = vadd.f32 %v692, %v995
    %997 = vmatprep.mubr.bf16.mxu0 %v642
    %998 = vmatmul.mubr.bf16.gmra.mxu0 %v641
    %v999 = vpop.f32.mrf.mxu0
    %v1000 = vadd.f32 %v688, %v999
    %v1001 = vpop.f32.mrf.mxu0
    %v1002 = vadd.f32 %v692, %v1001
    %v1003 = vpop.f32.mrf.mxu0
    %v1004 = vadd.f32 %v688, %v1003
    %v1005 = vpop.f32.mrf.mxu0
    %v1006 = vadd.f32 %v692, %v1005
    %1007 = vmatprep.mubr.bf16.mxu0 %v644
    %1008 = vmatmul.mubr.bf16.gmra.mxu0 %v643
    %v1009 = vpop.f32.mrf.mxu0
    %v1010 = vadd.f32 %v688, %v1009
    %v1011 = vpop.f32.mrf.mxu0
    %v1012 = vadd.f32 %v692, %v1011
    %v1013 = vpop.f32.mrf.mxu0
    %v1014 = vadd.f32 %v688, %v1013
    %v1015 = vpop.f32.mrf.mxu0
    %v1016 = vadd.f32 %v692, %v1015
    %1017 = vmatprep.mubr.bf16.mxu0 %v646
    %1018 = vmatmul.mubr.bf16.gmra.mxu0 %v645
    %v1019 = vpop.f32.mrf.mxu0
    %v1020 = vadd.f32 %v688, %v1019
    %v1021 = vpop.f32.mrf.mxu0
    %v1022 = vadd.f32 %v692, %v1021
    %v1023 = vpop.f32.mrf.mxu0
    %v1024 = vadd.f32 %v688, %v1023
    %v1025 = vpop.f32.mrf.mxu0
    %v1026 = vadd.f32 %v692, %v1025
    %1027 = vmatprep.mubr.bf16.mxu0 %v648
    %1028 = vmatmul.mubr.bf16.gmra.mxu0 %v647
    %v1029 = vpop.f32.mrf.mxu0
    %v1030 = vadd.f32 %v688, %v1029
    %v1031 = vpop.f32.mrf.mxu0
    %v1032 = vadd.f32 %v692, %v1031
    %v1033 = vpop.f32.mrf.mxu0
    %v1034 = vadd.f32 %v688, %v1033
    %v1035 = vpop.f32.mrf.mxu0
    %v1036 = vadd.f32 %v692, %v1035
    %1037 = vmatprep.mubr.bf16.mxu0 %v650
    %1038 = vmatmul.mubr.bf16.gmra.mxu0 %v649
    %v1039 = vpop.f32.mrf.mxu0
    %v1040 = vadd.f32 %v688, %v1039
    %v1041 = vpop.f32.mrf.mxu0
    %v1042 = vadd.f32 %v692, %v1041
    %v1043 = vpop.f32.mrf.mxu0
    %v1044 = vadd.f32 %v688, %v1043
    %v1045 = vpop.f32.mrf.mxu0
    %v1046 = vadd.f32 %v692, %v1045
    %1047 = vdwg.mxu0
    %v1048 = vadd.f32 %v890, %v62
    %v1049 = vadd.f32 %v892, %v63
    %v1050 = vadd.f32 %v894, %v64
    %v1051 = vadd.f32 %v896, %v65
    %v1052 = vadd.f32 %v900, %v66
    %v1053 = vadd.f32 %v902, %v67
    %v1054 = vadd.f32 %v904, %v68
    %v1055 = vadd.f32 %v906, %v69
    %v1056 = vadd.f32 %v910, %v70
    %v1057 = vadd.f32 %v912, %v71
    %v1058 = vadd.f32 %v914, %v72
    %v1059 = vadd.f32 %v916, %v73
    %v1060 = vadd.f32 %v920, %v74
    %v1061 = vadd.f32 %v922, %v75
    %v1062 = vadd.f32 %v924, %v76
    %v1063 = vadd.f32 %v926, %v77
    %v1064 = vadd.f32 %v930, %v78
    %v1065 = vadd.f32 %v932, %v79
    %v1066 = vadd.f32 %v934, %v80
    %v1067 = vadd.f32 %v936, %v81
    %v1068 = vadd.f32 %v940, %v82
    %v1069 = vadd.f32 %v942, %v83
    %v1070 = vadd.f32 %v944, %v84
    %v1071 = vadd.f32 %v946, %v85
    %v1072 = vadd.f32 %v950, %v86
    %v1073 = vadd.f32 %v952, %v87
    %v1074 = vadd.f32 %v954, %v88
    %v1075 = vadd.f32 %v956, %v89
    %v1076 = vadd.f32 %v960, %v90
    %v1077 = vadd.f32 %v962, %v91
    %v1078 = vadd.f32 %v964, %v92
    %v1079 = vadd.f32 %v966, %v93
    %v1080 = vadd.f32 %v970, %v94
    %v1081 = vadd.f32 %v972, %v95
    %v1082 = vadd.f32 %v974, %v96
    %v1083 = vadd.f32 %v976, %v97
    %v1084 = vadd.f32 %v980, %v98
    %v1085 = vadd.f32 %v982, %v99
    %v1086 = vadd.f32 %v984, %v100
    %v1087 = vadd.f32 %v986, %v101
    %v1088 = vadd.f32 %v990, %v102
    %v1089 = vadd.f32 %v992, %v103
    %v1090 = vadd.f32 %v994, %v104
    %v1091 = vadd.f32 %v996, %v105
    %v1092 = vadd.f32 %v1000, %v106
    %v1093 = vadd.f32 %v1002, %v107
    %v1094 = vadd.f32 %v1004, %v108
    %v1095 = vadd.f32 %v1006, %v109
    %v1096 = vadd.f32 %v1010, %v110
    %v1097 = vadd.f32 %v1012, %v111
    %v1098 = vadd.f32 %v1014, %v112
    %v1099 = vadd.f32 %v1016, %v113
    %v1100 = vadd.f32 %v1020, %v114
    %v1101 = vadd.f32 %v1022, %v115
    %v1102 = vadd.f32 %v1024, %v116
    %v1103 = vadd.f32 %v1026, %v117
    %v1104 = vadd.f32 %v1030, %v118
    %v1105 = vadd.f32 %v1032, %v119
    %v1106 = vadd.f32 %v1034, %v120
    %v1107 = vadd.f32 %v1036, %v121
    %v1108 = vadd.f32 %v1040, %v122
    %v1109 = vadd.f32 %v1042, %v123
    %v1110 = vadd.f32 %v1044, %v124
    %v1111 = vadd.f32 %v1046, %v125
    %1112 = vst [vmem:[#allocation8] sm:$0xff] %v1048
    %1113 = vst [vmem:[#allocation8 + $0x8] sm:$0xff] %v1049
    %1114 = vst [vmem:[#allocation8 + $0x10] sm:$0xff] %v1050
    %1115 = vst [vmem:[#allocation8 + $0x18] sm:$0xff] %v1051
    %1116 = vst [vmem:[#allocation8 + $0x20] sm:$0xff] %v1052
    %1117 = vst [vmem:[#allocation8 + $0x28] sm:$0xff] %v1053
    %1118 = vst [vmem:[#allocation8 + $0x30] sm:$0xff] %v1054
    %1119 = vst [vmem:[#allocation8 + $0x38] sm:$0xff] %v1055
    %1120 = vst [vmem:[#allocation8 + $0x40] sm:$0xff] %v1056
    %1121 = vst [vmem:[#allocation8 + $0x48] sm:$0xff] %v1057
    %1122 = vst [vmem:[#allocation8 + $0x50] sm:$0xff] %v1058
    %1123 = vst [vmem:[#allocation8 + $0x58] sm:$0xff] %v1059
    %1124 = vst [vmem:[#allocation8 + $0x60] sm:$0xff] %v1060
    %1125 = vst [vmem:[#allocation8 + $0x68] sm:$0xff] %v1061
    %1126 = vst [vmem:[#allocation8 + $0x70] sm:$0xff] %v1062
    %1127 = vst [vmem:[#allocation8 + $0x78] sm:$0xff] %v1063
    %1128 = vst [vmem:[#allocation8 + $0x80] sm:$0xff] %v1064
    %1129 = vst [vmem:[#allocation8 + $0x88] sm:$0xff] %v1065
    %1130 = vst [vmem:[#allocation8 + $0x90] sm:$0xff] %v1066
    %1131 = vst [vmem:[#allocation8 + $0x98] sm:$0xff] %v1067
    %1132 = vst [vmem:[#allocation8 + $0xa0] sm:$0xff] %v1068
    %1133 = vst [vmem:[#allocation8 + $0xa8] sm:$0xff] %v1069
    %1134 = vst [vmem:[#allocation8 + $0xb0] sm:$0xff] %v1070
    %1135 = vst [vmem:[#allocation8 + $0xb8] sm:$0xff] %v1071
    %1136 = vst [vmem:[#allocation8 + $0xc0] sm:$0xff] %v1072
    %1137 = vst [vmem:[#allocation8 + $0xc8] sm:$0xff] %v1073
    %1138 = vst [vmem:[#allocation8 + $0xd0] sm:$0xff] %v1074
    %1139 = vst [vmem:[#allocation8 + $0xd8] sm:$0xff] %v1075
    %1140 = vst [vmem:[#allocation8 + $0xe0] sm:$0xff] %v1076
    %1141 = vst [vmem:[#allocation8 + $0xe8] sm:$0xff] %v1077
    %1142 = vst [vmem:[#allocation8 + $0xf0] sm:$0xff] %v1078
    %1143 = vst [vmem:[#allocation8 + $0xf8] sm:$0xff] %v1079
    %1144 = vst [vmem:[#allocation8 + $0x100] sm:$0xff] %v1080
    %1145 = vst [vmem:[#allocation8 + $0x108] sm:$0xff] %v1081
    %1146 = vst [vmem:[#allocation8 + $0x110] sm:$0xff] %v1082
    %1147 = vst [vmem:[#allocation8 + $0x118] sm:$0xff] %v1083
    %1148 = vst [vmem:[#allocation8 + $0x120] sm:$0xff] %v1084
    %1149 = vst [vmem:[#allocation8 + $0x128] sm:$0xff] %v1085
    %1150 = vst [vmem:[#allocation8 + $0x130] sm:$0xff] %v1086
    %1151 = vst [vmem:[#allocation8 + $0x138] sm:$0xff] %v1087
    %1152 = vst [vmem:[#allocation8 + $0x140] sm:$0xff] %v1088
    %1153 = vst [vmem:[#allocation8 + $0x148] sm:$0xff] %v1089
    %1154 = vst [vmem:[#allocation8 + $0x150] sm:$0xff] %v1090
    %1155 = vst [vmem:[#allocation8 + $0x158] sm:$0xff] %v1091
    %1156 = vst [vmem:[#allocation8 + $0x160] sm:$0xff] %v1092
    %1157 = vst [vmem:[#allocation8 + $0x168] sm:$0xff] %v1093
    %1158 = vst [vmem:[#allocation8 + $0x170] sm:$0xff] %v1094
    %1159 = vst [vmem:[#allocation8 + $0x178] sm:$0xff] %v1095
    %1160 = vst [vmem:[#allocation8 + $0x180] sm:$0xff] %v1096
    %1161 = vst [vmem:[#allocation8 + $0x188] sm:$0xff] %v1097
    %1162 = vst [vmem:[#allocation8 + $0x190] sm:$0xff] %v1098
    %1163 = vst [vmem:[#allocation8 + $0x198] sm:$0xff] %v1099
    %1164 = vst [vmem:[#allocation8 + $0x1a0] sm:$0xff] %v1100
    %1165 = vst [vmem:[#allocation8 + $0x1a8] sm:$0xff] %v1101
    %1166 = vst [vmem:[#allocation8 + $0x1b0] sm:$0xff] %v1102
    %1167 = vst [vmem:[#allocation8 + $0x1b8] sm:$0xff] %v1103
    %1168 = vst [vmem:[#allocation8 + $0x1c0] sm:$0xff] %v1104
    %1169 = vst [vmem:[#allocation8 + $0x1c8] sm:$0xff] %v1105
    %1170 = vst [vmem:[#allocation8 + $0x1d0] sm:$0xff] %v1106
    %1171 = vst [vmem:[#allocation8 + $0x1d8] sm:$0xff] %v1107
    %1172 = vst [vmem:[#allocation8 + $0x1e0] sm:$0xff] %v1108
    %1173 = vst [vmem:[#allocation8 + $0x1e8] sm:$0xff] %v1109
    %1174 = vst [vmem:[#allocation8 + $0x1f0] sm:$0xff] %v1110
    %1175 = vst [vmem:[#allocation8 + $0x1f8] sm:$0xff] %v1111
    // Predicated region
    $region34: #{tpu_custom_call.1} parent=1 // pred_check
      _
    $region35: #{tpu_custom_call.1} parent=1 // pred_check_branch
      %1177 = sbr.rel (0) target = $region37
    $region36: #{tpu_custom_call.1} parent=1 // pred_region
      %s1179 = ssub.s32 8192, 8192
      %1180 = vsyncadd [#allocation4], %s1179
      %s1181 = sshll.u32 [#allocation8], 4
      %s1182 = int_to_ptr.vmem [resolvable:$true] %s1181
      %1187 = dma.vmem_to_hbm [thread:$0]  %s1182, 8192, %s5, [#allocation4], 256, 256, 16
    $region37: #{tpu_custom_call.1} parent=1 // pred_fallthru
      _
    // Predicated region
    $region38: #{tpu_custom_call.1} parent=1 // pred_check
      _
    $region39: #{tpu_custom_call.1} parent=1 // pred_check_branch
      %1189 = sbr.rel (0) target = $region41
    $region40: #{tpu_custom_call.1} parent=1 // pred_region
      %1190 = dma.done [#allocation4], 8192
    $region41: #{tpu_custom_call.1} parent=1 // pred_fallthru
      _
    %1191 = vsyncpa [#allocation3], 1
    %1192 = vsyncpa [#allocation6], 1
    %1193 = vsyncpa [#allocation4], 1

</llo_original>
